<compile_context>
chip_gen: v6e
topology: v6e:2x2x1
jax: 0.10.0
libtpu: 0.0.40
codegen_flags: <defaults>
</compile_context>

<pallas_src>
import jax
import jax.numpy as jnp
from jax.experimental import pallas as pl
from jax.experimental.pallas import tpu as pltpu

HIDDEN = 32            # hidden_dim (small, consistent with the module; default was 256)
HEADS = 8
HEAD_DIM = HIDDEN // HEADS
LN_EPS = 1e-5          # PyTorch nn.LayerNorm default
NEG_INF = -1e30        # finite stand-in for -inf; sigmoid(-1e30) == 0.0 exactly

# Row indices inside the packed (7, D) vector slab (biases / LN params).
_ROW_BO = 0
_ROW_G1, _ROW_BE1 = 1, 2
_ROW_B1, _ROW_B2 = 3, 4
_ROW_G2, _ROW_BE2 = 5, 6
NUM_VEC_ROWS = 7


def _layernorm(x, gamma, beta):
    mean = jnp.mean(x, axis=-1, keepdims=True)
    var = jnp.mean((x - mean) ** 2, axis=-1, keepdims=True)   # biased var, as in torch LN
    return (x - mean) * jax.lax.rsqrt(var + LN_EPS) * gamma + beta


def qim_kernel(qdt_ref, boxes_ref, mask_ref, lane_mask_ref, row_mask_ref,
               wqkv_ref, wrest_ref, vecs_ref, out_ref):
    D = qdt_ref.shape[-1]
    BN = mask_ref.shape[0]                   # flattened (batch_block * N) rows in this step

    vecs = vecs_ref[...]                     # (NUM_VEC_ROWS, D)

    # q = k = tgt = boxes + qdt ; flatten so every dense layer is a single matmul.
    x = (qdt_ref[...] + boxes_ref[...]).reshape(BN, D)

    # ---- fused Q/K/V projection (1/sqrt(head_dim) folded into Q cols; bias row fused) ----
    wqkv = wqkv_ref[...]                                         # (D+1, 3D)
    qkv = jnp.dot(x, wqkv[:D, :], preferred_element_type=jnp.float32) + wqkv[D:D + 1, :]
    q = qkv[:, 0:D]
    k = qkv[:, D:2 * D]
    v = qkv[:, 2 * D:3 * D]

    # ---- stacked-head sigmoid attention: two lane-dense matmuls for all heads ----
    # Column c = h*BN + j of k_stackedT holds k[j, :] with only head h's lanes kept, so
    # q @ k_stackedT gives every head's (BN, BN) score block side by side (lane-dense).
    k_stackedT = jnp.tile(k.T, (1, HEADS)) * lane_mask_ref[...]      # (D, H*BN)
    v_stacked = jnp.tile(v, (HEADS, 1)) * row_mask_ref[...]          # (H*BN, D)
    scores = jnp.dot(q, k_stackedT, preferred_element_type=jnp.float32) + mask_ref[...]
    attn = jax.nn.sigmoid(scores)            # NOTE: module uses sigmoid, not softmax
    # dropout on attn = identity (eval mode)
    attn_out = jnp.dot(attn, v_stacked, preferred_element_type=jnp.float32)   # (BN, D)

    # ---- final_linear of MultiheadAttention, residual, LayerNorm 1 ----
    tgt2 = jnp.dot(attn_out, wrest_ref[0], preferred_element_type=jnp.float32) \
        + vecs[_ROW_BO:_ROW_BO + 1, :]
    tgt = _layernorm(x + tgt2, vecs[_ROW_G1:_ROW_G1 + 1, :], vecs[_ROW_BE1:_ROW_BE1 + 1, :])

    # ---- FFN: linear2(dropout0(relu(linear1(tgt)))) ; residual ; LayerNorm 2 ----
    h1 = jnp.maximum(
        jnp.dot(tgt, wrest_ref[1], preferred_element_type=jnp.float32)
        + vecs[_ROW_B1:_ROW_B1 + 1, :], 0.0)
    ffn = jnp.dot(h1, wrest_ref[2], preferred_element_type=jnp.float32) \
        + vecs[_ROW_B2:_ROW_B2 + 1, :]
    tgt = _layernorm(tgt + ffn, vecs[_ROW_G2:_ROW_G2 + 1, :], vecs[_ROW_BE2:_ROW_BE2 + 1, :])

    out_ref[...] = tgt.reshape(out_ref.shape)


def pack_params(params):
    """Pack the 16 per-layer tensors into 3 slabs (done once, offline)."""
    (wq, bq, wk, bk, wv, bv, wo, bo, g1, be1, w1, b1, w2, b2, g2, be2) = params
    D = wq.shape[0]
    scale = 1.0 / (HEAD_DIM ** 0.5)          # 0.5 exactly here -> folding is FP-exact

    wqkv = jnp.concatenate([wq * scale, wk, wv], axis=1)            # (D, 3D)
    bqkv = jnp.concatenate([bq * scale, bk, bv], axis=1)            # (1, 3D)
    wqkv_aug = jnp.concatenate([wqkv, bqkv], axis=0)                # (D+1, 3D): bias as last row
    wrest = jnp.stack([wo, w1, w2], axis=0)                         # (3, D, D)

    vec_rows = [bo, g1, be1, b1, b2, g2, be2]
    vecs = jnp.concatenate([r.reshape(1, D) for r in vec_rows], axis=0)
    assert vecs.shape == (NUM_VEC_ROWS, D)
    return wqkv_aug, wrest, vecs


def build_consts(mask, B, N, *, num_batch_blocks=1):
    """Build the per-(N, batch-block) attention constants ONCE, off the per-call path."""
    D = HIDDEN
    G = num_batch_blocks
    assert B % G == 0
    BB = B // G
    BN = BB * N

    # Additive mask (module semantics: masked_fill(attn_mask == 0, -inf)), extended
    # block-diagonally over the batch block, then tiled across the H stacked heads.
    mask_add = jnp.where(mask == 0, jnp.float32(NEG_INF), jnp.float32(0.0))      # (N, N)
    b_ids = jnp.repeat(jnp.arange(BB), N)
    same_b = b_ids[:, None] == b_ids[None, :]
    mask_big = jnp.where(same_b, jnp.tile(mask_add, (BB, BB)), jnp.float32(NEG_INF))  # (BN, BN)
    mask_tiled = jnp.tile(mask_big, (1, HEADS))                                  # (BN, H*BN)

    head_of_lane = jnp.arange(D) // HEAD_DIM                                     # (D,)
    head_of_col = jnp.repeat(jnp.arange(HEADS), BN)                              # (H*BN,)
    lane_mask = (head_of_lane[:, None] == head_of_col[None, :]).astype(jnp.float32)  # (D, H*BN)
    row_mask = (head_of_col[:, None] == head_of_lane[None, :]).astype(jnp.float32)   # (H*BN, D)
    return mask_tiled, lane_mask, row_mask


def qim_forward(qdt, boxes, packed_params, consts, *, num_batch_blocks=1, dim_semantics=None):
    """qdt/boxes: (B, N, D) for one QIM call, or (T, B, N, D) to fuse T calls in one
    pallas_call (amortizes dispatch; weights/masks stay VMEM-resident across steps).

    num_batch_blocks=1: fully collapsed batch (best on single-TC v5e/v6e).
    num_batch_blocks=2 + dim_semantics=("arbitrary", pltpu.CORE_PARALLEL): v7x two-TC split.
    """
    squeeze_t = (qdt.ndim == 3)
    if squeeze_t:
        qdt = qdt[None]
        boxes = boxes[None]
    T, B, N, D = qdt.shape
    G = num_batch_blocks
    assert B % G == 0
    BB = B // G
    BN = BB * N

    wqkv_aug, wrest, vecs = packed_params
    mask_tiled, lane_mask, row_mask = consts
    assert mask_tiled.shape == (BN, HEADS * BN), "consts built for a different (N, BB)"

    def const_spec(shape):
        zeros = (0,) * len(shape)
        return pl.BlockSpec(shape, lambda t, g: zeros)

    io_block = (1, BB, N, D)
    io_map = lambda t, g: (t, g, 0, 0)

    in_specs = [
        pl.BlockSpec(io_block, io_map),          # qdt
        pl.BlockSpec(io_block, io_map),          # boxes
        const_spec(mask_tiled.shape),            # (BN, H*BN) additive mask
        const_spec(lane_mask.shape),             # (D, H*BN)  head lane mask
        const_spec(row_mask.shape),              # (H*BN, D)  head row mask
        const_spec(wqkv_aug.shape),              # fused QKV weight+bias slab
        const_spec(wrest.shape),                 # [wo | w1 | w2]
        const_spec(vecs.shape),                  # biases / LN params
    ]
    out_spec = pl.BlockSpec(io_block, io_map)

    if dim_semantics is None:
        dim_semantics = ("arbitrary", "parallel")

    # Advisory cost estimate so XLA schedules this tiny custom call sensibly.
    flops = T * G * (2 * BN * D * 3 * D            # fused QKV
                     + 4 * BN * HEADS * BN * D     # stacked-head scores + output
                     + 3 * 2 * BN * D * D)         # wo, w1, w2
    transcendentals = T * G * (HEADS * BN * BN + 4 * BN)
    bytes_accessed = 4 * (3 * T * B * N * D
                          + int(mask_tiled.size) + int(lane_mask.size) + int(row_mask.size)
                          + int(wqkv_aug.size) + int(wrest.size) + int(vecs.size))

    out = pl.pallas_call(
        qim_kernel,
        out_shape=jax.ShapeDtypeStruct((T, B, N, D), jnp.float32),
        grid_spec=pltpu.PrefetchScalarGridSpec(
            num_scalar_prefetch=0,
            grid=(T, G),
            in_specs=in_specs,
            out_specs=out_spec,
        ),
        compiler_params=pltpu.CompilerParams(dimension_semantics=dim_semantics),
        cost_estimate=pl.CostEstimate(flops=int(flops),
                                      transcendentals=int(transcendentals),
                                      bytes_accessed=int(bytes_accessed)),
    )(qdt, boxes, mask_tiled, lane_mask, row_mask, wqkv_aug, wrest, vecs)
    return out[0] if squeeze_t else out


def init_params(key, D):
    """Deterministic synthetic parameters (nn.Linear weights stored as (in, out))."""
    ks = jax.random.split(key, 6)

    def lin(k):
        kw, kb = jax.random.split(k)
        w = jax.random.normal(kw, (D, D), jnp.float32) * 0.02   # already "W^T": x @ w
        b = jax.random.normal(kb, (1, D), jnp.float32) * 0.02
        return w, b

    wq, bq = lin(ks[0])
    wk, bk = lin(ks[1])
    wv, bv = lin(ks[2])
    wo, bo = lin(ks[3])
    w1, b1 = lin(ks[4])
    w2, b2 = lin(ks[5])
    g1 = jnp.ones((1, D), jnp.float32)
    be1 = jnp.zeros((1, D), jnp.float32)
    g2 = jnp.ones((1, D), jnp.float32)
    be2 = jnp.zeros((1, D), jnp.float32)
    return [wq, bq, wk, bk, wv, bv, wo, bo, g1, be1, w1, b1, w2, b2, g2, be2]


def qim_reference(qdt, boxes, mask, params):
    """Pure-JAX reference mirroring the PyTorch module (eval mode)."""
    (wq, bq, wk, bk, wv, bv, wo, bo, g1, be1, w1, b1, w2, b2, g2, be2) = params
    B, N, D = qdt.shape
    x = qdt + boxes
    q = x @ wq + bq
    k = x @ wk + bk
    v = x @ wv + bv
    qh = q.reshape(B, N, HEADS, HEAD_DIM).transpose(0, 2, 1, 3)
    kh = k.reshape(B, N, HEADS, HEAD_DIM).transpose(0, 2, 1, 3)
    vh = v.reshape(B, N, HEADS, HEAD_DIM).transpose(0, 2, 1, 3)
    scores = jnp.einsum('bhnd,bhmd->bhnm', qh, kh) / (HEAD_DIM ** 0.5)
    scores = jnp.where(mask == 0, -jnp.inf, scores)
    attn = jax.nn.sigmoid(scores)
    attn_out = jnp.einsum('bhnm,bhmd->bhnd', attn, vh).transpose(0, 2, 1, 3).reshape(B, N, D)
    tgt2 = attn_out @ wo + bo
    tgt = _layernorm(x + tgt2, g1, be1)
    h1 = jnp.maximum(tgt @ w1 + b1, 0.0)
    ffn = h1 @ w2 + b2
    return _layernorm(tgt + ffn, g2, be2)


if __name__ == "__main__":
    B, N, D = 2, 8, HIDDEN

    key = jax.random.PRNGKey(0)
    k_qdt, k_box, k_par, k_qt, k_bt = jax.random.split(key, 5)

    qdt = jax.random.normal(k_qdt, (B, N, D), jnp.float32)
    boxes = jax.random.normal(k_box, (B, N, D), jnp.float32)
    # causal-style 0/1 attention mask (0 => masked with -inf before sigmoid)
    mask = jnp.tril(jnp.ones((N, N), jnp.float32))

    raw_params = init_params(k_par, D)
    packed = pack_params(raw_params)
    consts = build_consts(mask, B, N)          # built once, off the per-call path

    # single-call path (collapsed grid: one step on v5e/v6e)
    out = qim_forward(qdt, boxes, packed, consts)
    jax.block_until_ready(out)
    assert out.shape == (B, N, D)
    ref = qim_reference(qdt, boxes, mask, raw_params)
    assert jnp.allclose(out, ref, atol=1e-3, rtol=1e-3)

    # stacked-invocation path: T QIM calls fused into one pallas_call (dispatch amortized)
    T = 3
    qdt_t = jax.random.normal(k_qt, (T, B, N, D), jnp.float32)
    boxes_t = jax.random.normal(k_bt, (T, B, N, D), jnp.float32)
    out_t = qim_forward(qdt_t, boxes_t, packed, consts)
    jax.block_until_ready(out_t)
    ref_t = jax.vmap(lambda q, b: qim_reference(q, b, mask, raw_params))(qdt_t, boxes_t)
    assert out_t.shape == (T, B, N, D)
    assert jnp.allclose(out_t, ref_t, atol=1e-3, rtol=1e-3)

    print("KERNEL_OK")
</pallas_src>

<mosaic_0001>
module attributes {stable_mosaic.version = 11 : i64} {
  func.func @qim_kernel(%arg0: i32, %arg1: i32, %arg2: memref<1x2x8x32xf32, #tpu.memory_space<vmem>>, %arg3: memref<1x2x8x32xf32, #tpu.memory_space<vmem>>, %arg4: memref<16x128xf32, #tpu.memory_space<vmem>>, %arg5: memref<32x128xf32, #tpu.memory_space<vmem>>, %arg6: memref<128x32xf32, #tpu.memory_space<vmem>>, %arg7: memref<33x96xf32, #tpu.memory_space<vmem>>, %arg8: memref<3x32x32xf32, #tpu.memory_space<vmem>>, %arg9: memref<7x32xf32, #tpu.memory_space<vmem>>, %arg10: memref<1x2x8x32xf32, #tpu.memory_space<vmem>>) attributes {dimension_semantics = [#tpu.dimension_semantics<arbitrary>, #tpu.dimension_semantics<parallel>], iteration_bounds = array<i64: 1, 1>, scalar_prefetch = 0 : i64, scratch_operands = 0 : i64, tpu.core_type = #tpu.core_type<tc>, window_params = [{transform_indices = @transform_0, window_bounds = array<i64: 1, 2, 8, 32>}, {transform_indices = @transform_1, window_bounds = array<i64: 1, 2, 8, 32>}, {pipeline_mode = #tpu.pipeline_mode<synchronous>, transform_indices = @transform_2, window_bounds = array<i64: 16, 128>}, {pipeline_mode = #tpu.pipeline_mode<synchronous>, transform_indices = @transform_3, window_bounds = array<i64: 32, 128>}, {pipeline_mode = #tpu.pipeline_mode<synchronous>, transform_indices = @transform_4, window_bounds = array<i64: 128, 32>}, {pipeline_mode = #tpu.pipeline_mode<synchronous>, transform_indices = @transform_5, window_bounds = array<i64: 33, 96>}, {pipeline_mode = #tpu.pipeline_mode<synchronous>, transform_indices = @transform_6, window_bounds = array<i64: 3, 32, 32>}, {pipeline_mode = #tpu.pipeline_mode<synchronous>, transform_indices = @transform_7, window_bounds = array<i64: 7, 32>}, {transform_indices = @transform_8, window_bounds = array<i64: 1, 2, 8, 32>}]} {
    %c0 = arith.constant 0 : index
    %c0_0 = arith.constant 0 : index
    %0 = vector.load %arg9[%c0, %c0_0] : memref<7x32xf32, #tpu.memory_space<vmem>>, vector<7x32xf32>
    %c0_1 = arith.constant 0 : index
    %c0_2 = arith.constant 0 : index
    %c0_3 = arith.constant 0 : index
    %c0_4 = arith.constant 0 : index
    %1 = vector.load %arg2[%c0_1, %c0_2, %c0_3, %c0_4] : memref<1x2x8x32xf32, #tpu.memory_space<vmem>>, vector<1x2x8x32xf32>
    %c0_5 = arith.constant 0 : index
    %c0_6 = arith.constant 0 : index
    %c0_7 = arith.constant 0 : index
    %c0_8 = arith.constant 0 : index
    %2 = vector.load %arg3[%c0_5, %c0_6, %c0_7, %c0_8] : memref<1x2x8x32xf32, #tpu.memory_space<vmem>>, vector<1x2x8x32xf32>
    %3 = arith.addf %1, %2 : vector<1x2x8x32xf32>
    %4 = vector.shape_cast %3 : vector<1x2x8x32xf32> to vector<16x32xf32>
    %c0_9 = arith.constant 0 : index
    %c0_10 = arith.constant 0 : index
    %5 = vector.load %arg7[%c0_9, %c0_10] : memref<33x96xf32, #tpu.memory_space<vmem>>, vector<33x96xf32>
    %6 = vector.extract_strided_slice %5 {offsets = [0, 0], sizes = [32, 96], strides = [1, 1]} : vector<33x96xf32> to vector<32x96xf32>
    %cst = arith.constant dense<0.000000e+00> : vector<16x96xf32>
    %7 = tpu.matmul %4, %6, %cst {dimension_numbers = #tpu.dot_dimension_numbers<[1], [0], [0], [1], [0, 0, 1, 1], [], []>} : vector<16x32xf32>, vector<32x96xf32>, vector<16x96xf32> -> vector<16x96xf32>
    %8 = vector.extract_strided_slice %5 {offsets = [32, 0], sizes = [1, 96], strides = [1, 1]} : vector<33x96xf32> to vector<1x96xf32>
    %9 = vector.broadcast %8 : vector<1x96xf32> to vector<16x96xf32>
    %10 = arith.addf %7, %9 : vector<16x96xf32>
    %11 = vector.extract_strided_slice %10 {offsets = [0, 0], sizes = [16, 32], strides = [1, 1]} : vector<16x96xf32> to vector<16x32xf32>
    %12 = vector.extract_strided_slice %10 {offsets = [0, 32], sizes = [16, 32], strides = [1, 1]} : vector<16x96xf32> to vector<16x32xf32>
    %13 = vector.extract_strided_slice %10 {offsets = [0, 64], sizes = [16, 32], strides = [1, 1]} : vector<16x96xf32> to vector<16x32xf32>
    %14 = tpu.transpose %12, [1, 0] : vector<16x32xf32> -> vector<32x16xf32>
    %15 = tpu.concatenate %14, %14, %14, %14, %14, %14, %14, %14 in 1 : vector<32x16xf32>, vector<32x16xf32>, vector<32x16xf32>, vector<32x16xf32>, vector<32x16xf32>, vector<32x16xf32>, vector<32x16xf32>, vector<32x16xf32> -> vector<32x128xf32>
    %c0_11 = arith.constant 0 : index
    %c0_12 = arith.constant 0 : index
    %16 = vector.load %arg5[%c0_11, %c0_12] : memref<32x128xf32, #tpu.memory_space<vmem>>, vector<32x128xf32>
    %17 = arith.mulf %15, %16 : vector<32x128xf32>
    %18 = tpu.concatenate %13, %13, %13, %13, %13, %13, %13, %13 in 0 : vector<16x32xf32>, vector<16x32xf32>, vector<16x32xf32>, vector<16x32xf32>, vector<16x32xf32>, vector<16x32xf32>, vector<16x32xf32>, vector<16x32xf32> -> vector<128x32xf32>
    %c0_13 = arith.constant 0 : index
    %c0_14 = arith.constant 0 : index
    %19 = vector.load %arg6[%c0_13, %c0_14] : memref<128x32xf32, #tpu.memory_space<vmem>>, vector<128x32xf32>
    %20 = arith.mulf %18, %19 : vector<128x32xf32>
    %cst_15 = arith.constant dense<0.000000e+00> : vector<16x128xf32>
    %21 = tpu.matmul %11, %17, %cst_15 {dimension_numbers = #tpu.dot_dimension_numbers<[1], [0], [0], [1], [0, 0, 1, 1], [], []>} : vector<16x32xf32>, vector<32x128xf32>, vector<16x128xf32> -> vector<16x128xf32>
    %c0_16 = arith.constant 0 : index
    %c0_17 = arith.constant 0 : index
    %22 = vector.load %arg4[%c0_16, %c0_17] : memref<16x128xf32, #tpu.memory_space<vmem>>, vector<16x128xf32>
    %23 = arith.addf %21, %22 : vector<16x128xf32>
    %24 = arith.negf %23 : vector<16x128xf32>
    %25 = math.exp %24 : vector<16x128xf32>
    %cst_18 = arith.constant 1.000000e+00 : f32
    %26 = vector.broadcast %cst_18 : f32 to vector<16x128xf32>
    %27 = arith.addf %26, %25 : vector<16x128xf32>
    %28 = arith.divf %26, %27 : vector<16x128xf32>
    %cst_19 = arith.constant dense<0.000000e+00> : vector<16x32xf32>
    %29 = tpu.matmul %28, %20, %cst_19 {dimension_numbers = #tpu.dot_dimension_numbers<[1], [0], [0], [1], [0, 0, 1, 1], [], []>} : vector<16x128xf32>, vector<128x32xf32>, vector<16x32xf32> -> vector<16x32xf32>
    %c0_20 = arith.constant 0 : index
    %c0_21 = arith.constant 0 : index
    %c0_22 = arith.constant 0 : index
    %30 = vector.load %arg8[%c0_20, %c0_21, %c0_22] : memref<3x32x32xf32, #tpu.memory_space<vmem>>, vector<1x32x32xf32>
    %31 = vector.shape_cast %30 : vector<1x32x32xf32> to vector<32x32xf32>
    %cst_23 = arith.constant dense<0.000000e+00> : vector<16x32xf32>
    %32 = tpu.matmul %29, %31, %cst_23 {dimension_numbers = #tpu.dot_dimension_numbers<[1], [0], [0], [1], [0, 0, 1, 1], [], []>} : vector<16x32xf32>, vector<32x32xf32>, vector<16x32xf32> -> vector<16x32xf32>
    %33 = vector.extract_strided_slice %0 {offsets = [0, 0], sizes = [1, 32], strides = [1, 1]} : vector<7x32xf32> to vector<1x32xf32>
    %34 = vector.broadcast %33 : vector<1x32xf32> to vector<16x32xf32>
    %35 = arith.addf %32, %34 : vector<16x32xf32>
    %36 = arith.addf %4, %35 : vector<16x32xf32>
    %37 = vector.extract_strided_slice %0 {offsets = [1, 0], sizes = [1, 32], strides = [1, 1]} : vector<7x32xf32> to vector<1x32xf32>
    %38 = vector.extract_strided_slice %0 {offsets = [2, 0], sizes = [1, 32], strides = [1, 1]} : vector<7x32xf32> to vector<1x32xf32>
    %cst_24 = arith.constant dense<0.000000e+00> : vector<16xf32>
    %39 = vector.multi_reduction <add>, %36, %cst_24 [1] : vector<16x32xf32> to vector<16xf32>
    %40 = vector.shape_cast %39 : vector<16xf32> to vector<16x1xf32>
    %cst_25 = arith.constant 3.200000e+01 : f32
    %41 = vector.broadcast %cst_25 : f32 to vector<16x1xf32>
    %42 = arith.divf %40, %41 : vector<16x1xf32>
    %43 = vector.broadcast %42 : vector<16x1xf32> to vector<16x32xf32>
    %44 = arith.subf %36, %43 : vector<16x32xf32>
    %45 = arith.mulf %44, %44 : vector<16x32xf32>
    %cst_26 = arith.constant dense<0.000000e+00> : vector<16xf32>
    %46 = vector.multi_reduction <add>, %45, %cst_26 [1] : vector<16x32xf32> to vector<16xf32>
    %47 = vector.shape_cast %46 : vector<16xf32> to vector<16x1xf32>
    %cst_27 = arith.constant 3.200000e+01 : f32
    %48 = vector.broadcast %cst_27 : f32 to vector<16x1xf32>
    %49 = arith.divf %47, %48 : vector<16x1xf32>
    %50 = vector.broadcast %42 : vector<16x1xf32> to vector<16x32xf32>
    %51 = arith.subf %36, %50 : vector<16x32xf32>
    %cst_28 = arith.constant 9.99999974E-6 : f32
    %52 = vector.broadcast %cst_28 : f32 to vector<16x1xf32>
    %53 = arith.addf %49, %52 : vector<16x1xf32>
    %54 = math.rsqrt %53 : vector<16x1xf32>
    %55 = vector.broadcast %54 : vector<16x1xf32> to vector<16x32xf32>
    %56 = arith.mulf %51, %55 : vector<16x32xf32>
    %57 = vector.broadcast %37 : vector<1x32xf32> to vector<16x32xf32>
    %58 = arith.mulf %56, %57 : vector<16x32xf32>
    %59 = vector.broadcast %38 : vector<1x32xf32> to vector<16x32xf32>
    %60 = arith.addf %58, %59 : vector<16x32xf32>
    %c1 = arith.constant 1 : index
    %c0_29 = arith.constant 0 : index
    %c0_30 = arith.constant 0 : index
    %61 = vector.load %arg8[%c1, %c0_29, %c0_30] : memref<3x32x32xf32, #tpu.memory_space<vmem>>, vector<1x32x32xf32>
    %62 = vector.shape_cast %61 : vector<1x32x32xf32> to vector<32x32xf32>
    %cst_31 = arith.constant dense<0.000000e+00> : vector<16x32xf32>
    %63 = tpu.matmul %60, %62, %cst_31 {dimension_numbers = #tpu.dot_dimension_numbers<[1], [0], [0], [1], [0, 0, 1, 1], [], []>} : vector<16x32xf32>, vector<32x32xf32>, vector<16x32xf32> -> vector<16x32xf32>
    %64 = vector.extract_strided_slice %0 {offsets = [3, 0], sizes = [1, 32], strides = [1, 1]} : vector<7x32xf32> to vector<1x32xf32>
    %65 = vector.broadcast %64 : vector<1x32xf32> to vector<16x32xf32>
    %66 = arith.addf %63, %65 : vector<16x32xf32>
    %cst_32 = arith.constant 0.000000e+00 : f32
    %67 = vector.broadcast %cst_32 : f32 to vector<16x32xf32>
    %68 = arith.maximumf %66, %67 : vector<16x32xf32>
    %c2 = arith.constant 2 : index
    %c0_33 = arith.constant 0 : index
    %c0_34 = arith.constant 0 : index
    %69 = vector.load %arg8[%c2, %c0_33, %c0_34] : memref<3x32x32xf32, #tpu.memory_space<vmem>>, vector<1x32x32xf32>
    %70 = vector.shape_cast %69 : vector<1x32x32xf32> to vector<32x32xf32>
    %cst_35 = arith.constant dense<0.000000e+00> : vector<16x32xf32>
    %71 = tpu.matmul %68, %70, %cst_35 {dimension_numbers = #tpu.dot_dimension_numbers<[1], [0], [0], [1], [0, 0, 1, 1], [], []>} : vector<16x32xf32>, vector<32x32xf32>, vector<16x32xf32> -> vector<16x32xf32>
    %72 = vector.extract_strided_slice %0 {offsets = [4, 0], sizes = [1, 32], strides = [1, 1]} : vector<7x32xf32> to vector<1x32xf32>
    %73 = vector.broadcast %72 : vector<1x32xf32> to vector<16x32xf32>
    %74 = arith.addf %71, %73 : vector<16x32xf32>
    %75 = arith.addf %60, %74 : vector<16x32xf32>
    %76 = vector.extract_strided_slice %0 {offsets = [5, 0], sizes = [1, 32], strides = [1, 1]} : vector<7x32xf32> to vector<1x32xf32>
    %77 = vector.extract_strided_slice %0 {offsets = [6, 0], sizes = [1, 32], strides = [1, 1]} : vector<7x32xf32> to vector<1x32xf32>
    %cst_36 = arith.constant dense<0.000000e+00> : vector<16xf32>
    %78 = vector.multi_reduction <add>, %75, %cst_36 [1] : vector<16x32xf32> to vector<16xf32>
    %79 = vector.shape_cast %78 : vector<16xf32> to vector<16x1xf32>
    %cst_37 = arith.constant 3.200000e+01 : f32
    %80 = vector.broadcast %cst_37 : f32 to vector<16x1xf32>
    %81 = arith.divf %79, %80 : vector<16x1xf32>
    %82 = vector.broadcast %81 : vector<16x1xf32> to vector<16x32xf32>
    %83 = arith.subf %75, %82 : vector<16x32xf32>
    %84 = arith.mulf %83, %83 : vector<16x32xf32>
    %cst_38 = arith.constant dense<0.000000e+00> : vector<16xf32>
    %85 = vector.multi_reduction <add>, %84, %cst_38 [1] : vector<16x32xf32> to vector<16xf32>
    %86 = vector.shape_cast %85 : vector<16xf32> to vector<16x1xf32>
    %cst_39 = arith.constant 3.200000e+01 : f32
    %87 = vector.broadcast %cst_39 : f32 to vector<16x1xf32>
    %88 = arith.divf %86, %87 : vector<16x1xf32>
    %89 = vector.broadcast %81 : vector<16x1xf32> to vector<16x32xf32>
    %90 = arith.subf %75, %89 : vector<16x32xf32>
    %cst_40 = arith.constant 9.99999974E-6 : f32
    %91 = vector.broadcast %cst_40 : f32 to vector<16x1xf32>
    %92 = arith.addf %88, %91 : vector<16x1xf32>
    %93 = math.rsqrt %92 : vector<16x1xf32>
    %94 = vector.broadcast %93 : vector<16x1xf32> to vector<16x32xf32>
    %95 = arith.mulf %90, %94 : vector<16x32xf32>
    %96 = vector.broadcast %76 : vector<1x32xf32> to vector<16x32xf32>
    %97 = arith.mulf %95, %96 : vector<16x32xf32>
    %98 = vector.broadcast %77 : vector<1x32xf32> to vector<16x32xf32>
    %99 = arith.addf %97, %98 : vector<16x32xf32>
    %100 = vector.shape_cast %99 : vector<16x32xf32> to vector<1x2x8x32xf32>
    %c0_41 = arith.constant 0 : index
    %c0_42 = arith.constant 0 : index
    %c0_43 = arith.constant 0 : index
    %c0_44 = arith.constant 0 : index
    %101 = vector.load %arg10[%c0_41, %c0_42, %c0_43, %c0_44] : memref<1x2x8x32xf32, #tpu.memory_space<vmem>>, vector<1x2x8x32xf32>
    tpu.vector_store %arg10[%c0_41, %c0_42, %c0_43, %c0_44], %100 {strides = array<i32>} : memref<1x2x8x32xf32, #tpu.memory_space<vmem>>, vector<1x2x8x32xf32>,
    return
  }
  func.func @transform_0(%arg0: i32, %arg1: i32) -> (i32, i32, i32, i32) {
    %c0_i32 = arith.constant 0 : i32
    %c0_i32_0 = arith.constant 0 : i32
    %c0_i32_1 = arith.constant 0 : i32
    return %arg0, %arg1, %c0_i32, %c0_i32_0 : i32, i32, i32, i32
  }
  func.func @transform_1(%arg0: i32, %arg1: i32) -> (i32, i32, i32, i32) {
    %c0_i32 = arith.constant 0 : i32
    %c0_i32_0 = arith.constant 0 : i32
    %c0_i32_1 = arith.constant 0 : i32
    return %arg0, %arg1, %c0_i32, %c0_i32_0 : i32, i32, i32, i32
  }
  func.func @transform_2(%arg0: i32, %arg1: i32) -> (i32, i32) {
    %c0_i32 = arith.constant 0 : i32
    %c0_i32_0 = arith.constant 0 : i32
    %c0_i32_1 = arith.constant 0 : i32
    return %c0_i32, %c0_i32_0 : i32, i32
  }
  func.func @transform_3(%arg0: i32, %arg1: i32) -> (i32, i32) {
    %c0_i32 = arith.constant 0 : i32
    %c0_i32_0 = arith.constant 0 : i32
    %c0_i32_1 = arith.constant 0 : i32
    return %c0_i32, %c0_i32_0 : i32, i32
  }
  func.func @transform_4(%arg0: i32, %arg1: i32) -> (i32, i32) {
    %c0_i32 = arith.constant 0 : i32
    %c0_i32_0 = arith.constant 0 : i32
    %c0_i32_1 = arith.constant 0 : i32
    return %c0_i32, %c0_i32_0 : i32, i32
  }
  func.func @transform_5(%arg0: i32, %arg1: i32) -> (i32, i32) {
    %c0_i32 = arith.constant 0 : i32
    %c0_i32_0 = arith.constant 0 : i32
    %c0_i32_1 = arith.constant 0 : i32
    return %c0_i32, %c0_i32_0 : i32, i32
  }
  func.func @transform_6(%arg0: i32, %arg1: i32) -> (i32, i32, i32) {
    %c0_i32 = arith.constant 0 : i32
    %c0_i32_0 = arith.constant 0 : i32
    %c0_i32_1 = arith.constant 0 : i32
    %c0_i32_2 = arith.constant 0 : i32
    return %c0_i32, %c0_i32_0, %c0_i32_1 : i32, i32, i32
  }
  func.func @transform_7(%arg0: i32, %arg1: i32) -> (i32, i32) {
    %c0_i32 = arith.constant 0 : i32
    %c0_i32_0 = arith.constant 0 : i32
    %c0_i32_1 = arith.constant 0 : i32
    return %c0_i32, %c0_i32_0 : i32, i32
  }
  func.func @transform_8(%arg0: i32, %arg1: i32) -> (i32, i32, i32, i32) {
    %c0_i32 = arith.constant 0 : i32
    %c0_i32_0 = arith.constant 0 : i32
    %c0_i32_1 = arith.constant 0 : i32
    return %arg0, %arg1, %c0_i32, %c0_i32_0 : i32, i32, i32, i32
  }
}

</mosaic_0001>

<llo_original>
// kernel: tpu_custom_call.1
$region0: #{tpu_custom_call.1}
  #allocation0 [shape = 'u32[]', space=smem, size = 0x4, offset = 0x4, fixed_abs, tag = 'smem constant byte address 0x4 - core index']
  #allocation1 [shape = 'u32[144,128]{1,0:T(1,128)}', space=vmem, size = 0x12000, scoped, tag = 'internal scratch']
  %s0 = inlined_call_operand.hbm [shape: f32[1,2,8,32], index: 0, kind: input, shape index: {}]
  %s1 = inlined_call_operand.hbm [shape: f32[1,2,8,32], index: 1, kind: input, shape index: {}]
  %s2 = inlined_call_operand.hbm [shape: f32[16,128], index: 2, kind: input, shape index: {}]
  %s3 = inlined_call_operand.vmem [shape: f32[32,128], index: 3, kind: input, shape index: {}]
  %s4 = inlined_call_operand.vmem [shape: f32[128,32], index: 4, kind: input, shape index: {}]
  %s5 = inlined_call_operand.vmem [shape: f32[33,96], index: 5, kind: input, shape index: {}]
  %s6 = inlined_call_operand.vmem [shape: f32[3,32,32], index: 6, kind: input, shape index: {}]
  %s7 = inlined_call_operand.hbm [shape: f32[7,32], index: 7, kind: input, shape index: {}]
  %s8 = inlined_call_operand.hbm [shape: f32[1,2,8,32], index: 8, kind: output, shape index: {}]
  %s9 = sld [smem:[#allocation0]]
  $region58: #{tpu_custom_call.1} parent=0
    _
  %s11 = ssub.s32 1, %s9
  %s12 = scalar_select 0, %s11, %s9
  $region1: #{tpu_custom_call.1} parent=0
    #allocation2 [shape = 'u8[8192]{0}', space=vmem, size = 0x2000, scoped, tag = 'input window, operand 0, single buffered']
    #allocation3 [shape = 's32[1]{0}', space=sflag, size = 0x4, scoped, tag = 'scoped memory for tpu_custom_call.1']
    #allocation4 [shape = 's32[1]{0}', space=sflag, size = 0x4, scoped, tag = 'scoped memory for tpu_custom_call.1']
    #allocation5 [shape = 'u8[8192]{0}', space=vmem, size = 0x2000, scoped, tag = 'input window, operand 1, single buffered']
    #allocation6 [shape = 's32[1]{0}', space=sflag, size = 0x4, scoped, tag = 'scoped memory for tpu_custom_call.1']
    #allocation7 [shape = 'u8[8192]{0}', space=vmem, size = 0x2000, scoped, tag = 'input window, operand 2, single buffered']
    #allocation8 [shape = 'u8[4096]{0}', space=vmem, size = 0x1000, scoped, tag = 'input window, operand 7, single buffered']
    #allocation9 [shape = 's32[1]{0}', space=sflag, size = 0x4, scoped, tag = 'scoped memory for tpu_custom_call.1']
    #allocation10 [shape = 'u8[8192]{0}', space=vmem, size = 0x2000, scoped, tag = 'output window, operand 0, single buffered']
    %13 = vsyncpa [#allocation3], 0
    %14 = vsyncpa [#allocation6], 0
    %15 = vsyncpa [#allocation9], 0
    %16 = vsyncpa [#allocation4], 0
    // Predicated region
    $region2: #{tpu_custom_call.1} parent=1 // pred_check
      _
    $region3: #{tpu_custom_call.1} parent=1 // pred_check_branch
      %18 = sbr.rel (0) target = $region5
    $region4: #{tpu_custom_call.1} parent=1 // pred_region
      %s20 = ssub.s32 256, 256
      %21 = vsyncadd [#allocation3], %s20
      %s22 = sshll.u32 [#allocation2], 4
      %s23 = int_to_ptr.vmem [resolvable:$true] %s22
      %28 = dma.hbm_to_vmem [thread:$0]  %s0, 256, %s23, [#allocation3], 128, 128, 8
    $region5: #{tpu_custom_call.1} parent=1 // pred_fallthru
      _
    // Predicated region
    $region6: #{tpu_custom_call.1} parent=1 // pred_check
      _
    $region7: #{tpu_custom_call.1} parent=1 // pred_check_branch
      %30 = sbr.rel (0) target = $region9
    $region8: #{tpu_custom_call.1} parent=1 // pred_region
      %s32 = ssub.s32 256, 256
      %33 = vsyncadd [#allocation6], %s32
      %s34 = sshll.u32 [#allocation5], 4
      %s35 = int_to_ptr.vmem [resolvable:$true] %s34
      %40 = dma.hbm_to_vmem [thread:$0]  %s1, 256, %s35, [#allocation6], 128, 128, 8
    $region9: #{tpu_custom_call.1} parent=1 // pred_fallthru
      _
    // Predicated region
    $region10: #{tpu_custom_call.1} parent=1 // pred_check
      _
    $region11: #{tpu_custom_call.1} parent=1 // pred_check_branch
      %42 = sbr.rel (0) target = $region13
    $region12: #{tpu_custom_call.1} parent=1 // pred_region
      %s44 = ssub.s32 256, 256
      %45 = vsyncadd [#allocation6], %s44
      %s46 = sshll.u32 [#allocation7], 4
      %s47 = int_to_ptr.vmem [resolvable:$true] %s46
      %52 = dma.hbm_to_vmem [thread:$0]  %s2, 256, %s47, [#allocation6], 128, 128, 8
    $region13: #{tpu_custom_call.1} parent=1 // pred_fallthru
      _
    // Predicated region
    $region14: #{tpu_custom_call.1} parent=1 // pred_check
      _
    $region15: #{tpu_custom_call.1} parent=1 // pred_check_branch
      %54 = sbr.rel (0) target = $region17
    $region16: #{tpu_custom_call.1} parent=1 // pred_region
      _
    $region17: #{tpu_custom_call.1} parent=1 // pred_fallthru
      _
    // Predicated region
    $region18: #{tpu_custom_call.1} parent=1 // pred_check
      _
    $region19: #{tpu_custom_call.1} parent=1 // pred_check_branch
      %56 = sbr.rel (0) target = $region21
    $region20: #{tpu_custom_call.1} parent=1 // pred_region
      _
    $region21: #{tpu_custom_call.1} parent=1 // pred_fallthru
      _
    // Predicated region
    $region22: #{tpu_custom_call.1} parent=1 // pred_check
      _
    $region23: #{tpu_custom_call.1} parent=1 // pred_check_branch
      %58 = sbr.rel (0) target = $region25
    $region24: #{tpu_custom_call.1} parent=1 // pred_region
      _
    $region25: #{tpu_custom_call.1} parent=1 // pred_fallthru
      _
    // Predicated region
    $region26: #{tpu_custom_call.1} parent=1 // pred_check
      _
    $region27: #{tpu_custom_call.1} parent=1 // pred_check_branch
      %60 = sbr.rel (0) target = $region29
    $region28: #{tpu_custom_call.1} parent=1 // pred_region
      _
    $region29: #{tpu_custom_call.1} parent=1 // pred_fallthru
      _
    // Predicated region
    $region30: #{tpu_custom_call.1} parent=1 // pred_check
      _
    $region31: #{tpu_custom_call.1} parent=1 // pred_check_branch
      %62 = sbr.rel (0) target = $region33
    $region32: #{tpu_custom_call.1} parent=1 // pred_region
      %s64 = ssub.s32 128, 128
      %65 = vsyncadd [#allocation9], %s64
      %s67 = sshll.u32 [#allocation8], 4
      %s68 = int_to_ptr.vmem [resolvable:$true] %s67
      %70 = dma.hbm_to_vmem [thread:$0]  %s7, 128, %s68, [#allocation9]
    $region33: #{tpu_custom_call.1} parent=1 // pred_fallthru
      _
    // Predicated region
    $region34: #{tpu_custom_call.1} parent=1 // pred_check
      _
    $region35: #{tpu_custom_call.1} parent=1 // pred_check_branch
      %72 = sbr.rel (0) target = $region37
    $region36: #{tpu_custom_call.1} parent=1 // pred_region
      %73 = dma.done [#allocation3], 256
    $region37: #{tpu_custom_call.1} parent=1 // pred_fallthru
      _
    // Predicated region
    $region38: #{tpu_custom_call.1} parent=1 // pred_check
      _
    $region39: #{tpu_custom_call.1} parent=1 // pred_check_branch
      %75 = sbr.rel (0) target = $region41
    $region40: #{tpu_custom_call.1} parent=1 // pred_region
      %76 = dma.done [#allocation6], 256
    $region41: #{tpu_custom_call.1} parent=1 // pred_fallthru
      _
    // Predicated region
    $region42: #{tpu_custom_call.1} parent=1 // pred_check
      _
    $region43: #{tpu_custom_call.1} parent=1 // pred_check_branch
      %78 = sbr.rel (0) target = $region45
    $region44: #{tpu_custom_call.1} parent=1 // pred_region
      %79 = dma.done [#allocation6], 256
    $region45: #{tpu_custom_call.1} parent=1 // pred_fallthru
      _
    // Predicated region
    $region46: #{tpu_custom_call.1} parent=1 // pred_check
      _
    $region47: #{tpu_custom_call.1} parent=1 // pred_check_branch
      %81 = sbr.rel (0) target = $region49
    $region48: #{tpu_custom_call.1} parent=1 // pred_region
      %82 = dma.done [#allocation9], 128
    $region49: #{tpu_custom_call.1} parent=1 // pred_fallthru
      _
    %v83 = vld [vmem:[#allocation8] sm:$0x7f]
    %v84 = vld [vmem:[#allocation2] sm:$0xff]
    %v85 = vld [vmem:[#allocation2 + $0x8] sm:$0xff]
    %v86 = vld [vmem:[#allocation5] sm:$0xff]
    %v87 = vld [vmem:[#allocation5 + $0x8] sm:$0xff]
    %v88 = vadd.f32 %v84, %v86
    %v89 = vadd.f32 %v85, %v87
    %v90 = vld [vmem:[%s5] sm:$0xff]
    %v91 = vld [vmem:[%s5 + $0x8] sm:$0xff]
    %v92 = vld [vmem:[%s5 + $0x10] sm:$0xff]
    %v93 = vld [vmem:[%s5 + $0x18] sm:$0xff]
    %v94 = vld [vmem:[%s5 + $0x20] sm:$0x1]
    %v95 = vlaneseq
    %v96 = vshrl.u32 %v95, 7
    %v97 = vsub.s32 0, %v96
    %v98 = vrot.slane %v94, %v97
    %vm99 = vcmask 261120
    %v101 = vsel %vm99, %v88, 0
    %v104 = vsel %vm99, %v89, 0
    %106 = vmatprep.subr.mxu0 0.0
    %107 = vmatpush1.msra.mxu0 0.0
    %108 = vmatprep.subr.mxu0 0.0
    %109 = vmatpush1.msra.mxu0 0.0
    %110 = vmatprep.subr.mxu0 0.0
    %111 = vmatpush1.msra.mxu0 0.0
    %112 = vmatprep.subr.mxu0 0.0
    %113 = vmatpush1.msra.mxu0 0.0
    %114 = vmatprep.subr.mxu0 0.0
    %115 = vmatpush1.msra.mxu0 0.0
    %116 = vmatprep.subr.mxu0 0.0
    %117 = vmatpush1.msra.mxu0 0.0
    %118 = vmatprep.subr.mxu0 0.0
    %119 = vmatpush1.msra.mxu0 0.0
    %120 = vmatprep.subr.mxu0 0.0
    %121 = vmatpush1.msra.mxu0 0.0
    %122 = vmatprep.subr.mxu0 0.0
    %123 = vmatpush1.msra.mxu0 0.0
    %124 = vmatprep.subr.mxu0 0.0
    %125 = vmatpush1.msra.mxu0 0.0
    %126 = vmatprep.subr.mxu0 0.0
    %127 = vmatpush1.msra.mxu0 0.0
    %128 = vmatprep.subr.mxu0 0.0
    %129 = vmatpush1.msra.mxu0 0.0
    %130 = vmatprep.subr.mxu0 0.0
    %131 = vmatpush1.msra.mxu0 %v93
    %132 = vmatprep.subr.mxu0 0.0
    %133 = vmatpush1.msra.mxu0 %v92
    %134 = vmatprep.subr.mxu0 0.0
    %135 = vmatpush1.msra.mxu0 %v91
    %136 = vmatprep.subr.mxu0 0.0
    %137 = vmatpush1.msra.mxu0 %v90
    %138 = vmatprep.subr.mxu0 0.0
    %139 = vmatpush2.msra.mxu0 0.0
    %140 = vmatprep.subr.mxu0 0.0
    %141 = vmatpush2.msra.mxu0 0.0
    %142 = vmatprep.subr.mxu0 0.0
    %143 = vmatpush2.msra.mxu0 0.0
    %144 = vmatprep.subr.mxu0 0.0
    %145 = vmatpush2.msra.mxu0 0.0
    %146 = vmatprep.subr.mxu0 0.0
    %147 = vmatpush2.msra.mxu0 0.0
    %148 = vmatprep.subr.mxu0 0.0
    %149 = vmatpush2.msra.mxu0 0.0
    %150 = vmatprep.subr.mxu0 0.0
    %151 = vmatpush2.msra.mxu0 0.0
    %152 = vmatprep.subr.mxu0 0.0
    %153 = vmatpush2.msra.mxu0 0.0
    %154 = vmatprep.subr.mxu0 0.0
    %155 = vmatpush2.msra.mxu0 0.0
    %156 = vmatprep.subr.mxu0 0.0
    %157 = vmatpush2.msra.mxu0 0.0
    %158 = vmatprep.subr.mxu0 0.0
    %159 = vmatpush2.msra.mxu0 0.0
    %160 = vmatprep.subr.mxu0 0.0
    %161 = vmatpush2.msra.mxu0 0.0
    %162 = vmatprep.subr.mxu0 0.0
    %163 = vmatpush2.msra.mxu0 0.0
    %164 = vmatprep.subr.mxu0 0.0
    %165 = vmatpush2.msra.mxu0 0.0
    %166 = vmatprep.subr.mxu0 0.0
    %167 = vmatpush2.msra.mxu0 0.0
    %168 = vmatprep.subr.mxu0 0.0
    %169 = vmatpush2.msra.mxu0 0.0
    %170 = vmatprep.mubr.f32.mxu0 0.0
    %171 = vmatmul.mubr.f32.gmra.mxu0 %v101
    %v172 = vpop.f32.mrf.mxu0
    %v173 = vadd.f32 %v98, %v172
    %v174 = vpop.f32.mrf.mxu0
    %175 = vmatprep.mubr.f32.mxu0 0.0
    %176 = vmatmul.mubr.f32.gmra.mxu0 %v104
    %v177 = vpop.f32.mrf.mxu0
    %v178 = vadd.f32 %v98, %v177
    %v179 = vpop.f32.mrf.mxu0
    %180 = vdwg.mxu0
    %183 = vrot.lane.b32.xlu0 %v173, 96
    %v184 = vpop.permute.xlu0 %183
    %185 = vrot.lane.b32.xlu0 %v178, 96
    %v186 = vpop.permute.xlu0 %185
    %189 = vxpose.xlu0.b32.start [1/16] %v184, 128
    %190 = vxpose.xlu0.b32.cont [2/16] %v186, 128
    %191 = vxpose.xlu0.b32.cont [3/16] 0.0, 128
    %192 = vxpose.xlu0.b32.cont [4/16] 0.0, 128
    %193 = vxpose.xlu0.b32.cont [5/16] 0.0, 128
    %194 = vxpose.xlu0.b32.cont [6/16] 0.0, 128
    %195 = vxpose.xlu0.b32.cont [7/16] 0.0, 128
    %196 = vxpose.xlu0.b32.cont [8/16] 0.0, 128
    %197 = vxpose.xlu0.b32.cont [9/16] 0.0, 128
    %198 = vxpose.xlu0.b32.cont [10/16] 0.0, 128
    %199 = vxpose.xlu0.b32.cont [11/16] 0.0, 128
    %200 = vxpose.xlu0.b32.cont [12/16] 0.0, 128
    %201 = vxpose.xlu0.b32.cont [13/16] 0.0, 128
    %202 = vxpose.xlu0.b32.cont [14/16] 0.0, 128
    %203 = vxpose.xlu0.b32.cont [15/16] 0.0, 128
    %204 = vxpose.xlu0.b32.end [16/16] 0.0, 128
    %v205 = vpop.trf.xlu0
    %v206 = vpop.trf.xlu0
    %v207 = vpop.trf.xlu0
    %v208 = vpop.trf.xlu0
    %v209 = vpop.trf.xlu0
    %v210 = vpop.trf.xlu0
    %v211 = vpop.trf.xlu0
    %v212 = vpop.trf.xlu0
    %v213 = vpop.trf.xlu0
    %v214 = vpop.trf.xlu0
    %v215 = vpop.trf.xlu0
    %v216 = vpop.trf.xlu0
    %v217 = vpop.trf.xlu0
    %v218 = vpop.trf.xlu0
    %v219 = vpop.trf.xlu0
    %v220 = vpop.trf.xlu0
    %225 = vrot.lane.b32.xlu0 %v205, 16
    %v226 = vpop.permute.xlu0 %225
    %227 = vrot.lane.b32.xlu0 %v206, 16
    %v228 = vpop.permute.xlu0 %227
    %229 = vrot.lane.b32.xlu0 %v207, 16
    %v230 = vpop.permute.xlu0 %229
    %231 = vrot.lane.b32.xlu0 %v208, 16
    %v232 = vpop.permute.xlu0 %231
    %237 = vrot.lane.b32.xlu0 %v205, 32
    %v238 = vpop.permute.xlu0 %237
    %239 = vrot.lane.b32.xlu0 %v206, 32
    %v240 = vpop.permute.xlu0 %239
    %241 = vrot.lane.b32.xlu0 %v207, 32
    %v242 = vpop.permute.xlu0 %241
    %243 = vrot.lane.b32.xlu0 %v208, 32
    %v244 = vpop.permute.xlu0 %243
    %249 = vrot.lane.b32.xlu0 %v205, 48
    %v250 = vpop.permute.xlu0 %249
    %251 = vrot.lane.b32.xlu0 %v206, 48
    %v252 = vpop.permute.xlu0 %251
    %253 = vrot.lane.b32.xlu0 %v207, 48
    %v254 = vpop.permute.xlu0 %253
    %255 = vrot.lane.b32.xlu0 %v208, 48
    %v256 = vpop.permute.xlu0 %255
    %261 = vrot.lane.b32.xlu0 %v205, 64
    %v262 = vpop.permute.xlu0 %261
    %263 = vrot.lane.b32.xlu0 %v206, 64
    %v264 = vpop.permute.xlu0 %263
    %265 = vrot.lane.b32.xlu0 %v207, 64
    %v266 = vpop.permute.xlu0 %265
    %267 = vrot.lane.b32.xlu0 %v208, 64
    %v268 = vpop.permute.xlu0 %267
    %273 = vrot.lane.b32.xlu0 %v205, 80
    %v274 = vpop.permute.xlu0 %273
    %275 = vrot.lane.b32.xlu0 %v206, 80
    %v276 = vpop.permute.xlu0 %275
    %277 = vrot.lane.b32.xlu0 %v207, 80
    %v278 = vpop.permute.xlu0 %277
    %279 = vrot.lane.b32.xlu0 %v208, 80
    %v280 = vpop.permute.xlu0 %279
    %285 = vrot.lane.b32.xlu0 %v205, 96
    %v286 = vpop.permute.xlu0 %285
    %287 = vrot.lane.b32.xlu0 %v206, 96
    %v288 = vpop.permute.xlu0 %287
    %289 = vrot.lane.b32.xlu0 %v207, 96
    %v290 = vpop.permute.xlu0 %289
    %291 = vrot.lane.b32.xlu0 %v208, 96
    %v292 = vpop.permute.xlu0 %291
    %297 = vrot.lane.b32.xlu0 %v205, 112
    %v298 = vpop.permute.xlu0 %297
    %299 = vrot.lane.b32.xlu0 %v206, 112
    %v300 = vpop.permute.xlu0 %299
    %301 = vrot.lane.b32.xlu0 %v207, 112
    %v302 = vpop.permute.xlu0 %301
    %303 = vrot.lane.b32.xlu0 %v208, 112
    %v304 = vpop.permute.xlu0 %303
    %vm309 = vcmask 130048
    %v310 = vsel %vm309, %v205, %v226
    %v311 = vsel %vm309, %v206, %v228
    %v312 = vsel %vm309, %v207, %v230
    %v313 = vsel %vm309, %v208, %v232
    %v314 = vsel %vm99, %v310, %v238
    %v315 = vsel %vm99, %v311, %v240
    %v316 = vsel %vm99, %v312, %v242
    %v317 = vsel %vm99, %v313, %v244
    %vm318 = vcmask 392192
    %v319 = vsel %vm318, %v314, %v250
    %v320 = vsel %vm318, %v315, %v252
    %v321 = vsel %vm318, %v316, %v254
    %v322 = vsel %vm318, %v317, %v256
    %vm323 = vcmask 523264
    %v324 = vsel %vm323, %v319, %v262
    %v325 = vsel %vm323, %v320, %v264
    %v326 = vsel %vm323, %v321, %v266
    %v327 = vsel %vm323, %v322, %v268
    %vm328 = vcmask 654336
    %v329 = vsel %vm328, %v324, %v274
    %v330 = vsel %vm328, %v325, %v276
    %v331 = vsel %vm328, %v326, %v278
    %v332 = vsel %vm328, %v327, %v280
    %vm333 = vcmask 785408
    %v334 = vsel %vm333, %v329, %v286
    %v335 = vsel %vm333, %v330, %v288
    %v336 = vsel %vm333, %v331, %v290
    %v337 = vsel %vm333, %v332, %v292
    %vm338 = vcmask 916480
    %v339 = vsel %vm338, %v334, %v298
    %v340 = vsel %vm338, %v335, %v300
    %v341 = vsel %vm338, %v336, %v302
    %v342 = vsel %vm338, %v337, %v304
    %v343 = vld [vmem:[%s3] sm:$0xff]
    %v344 = vld [vmem:[%s3 + $0x8] sm:$0xff]
    %v345 = vld [vmem:[%s3 + $0x10] sm:$0xff]
    %v346 = vld [vmem:[%s3 + $0x18] sm:$0xff]
    %v347 = vmul.f32 %v339, %v343
    %v348 = vmul.f32 %v340, %v344
    %v349 = vmul.f32 %v341, %v345
    %v350 = vmul.f32 %v342, %v346
    %v351 = vld [vmem:[%s4] sm:$0xff]
    %v352 = vld [vmem:[%s4 + $0x8] sm:$0xff]
    %v353 = vld [vmem:[%s4 + $0x10] sm:$0xff]
    %v354 = vld [vmem:[%s4 + $0x18] sm:$0xff]
    %v355 = vld [vmem:[%s4 + $0x20] sm:$0xff]
    %v356 = vld [vmem:[%s4 + $0x28] sm:$0xff]
    %v357 = vld [vmem:[%s4 + $0x30] sm:$0xff]
    %v358 = vld [vmem:[%s4 + $0x38] sm:$0xff]
    %v359 = vld [vmem:[%s4 + $0x40] sm:$0xff]
    %v360 = vld [vmem:[%s4 + $0x48] sm:$0xff]
    %v361 = vld [vmem:[%s4 + $0x50] sm:$0xff]
    %v362 = vld [vmem:[%s4 + $0x58] sm:$0xff]
    %v363 = vld [vmem:[%s4 + $0x60] sm:$0xff]
    %v364 = vld [vmem:[%s4 + $0x68] sm:$0xff]
    %v365 = vld [vmem:[%s4 + $0x70] sm:$0xff]
    %v366 = vld [vmem:[%s4 + $0x78] sm:$0xff]
    %383 = vrot.lane.b32.xlu0 %v351, 64
    %v384 = vpop.permute.xlu0 %383
    %385 = vrot.lane.b32.xlu0 %v352, 64
    %v386 = vpop.permute.xlu0 %385
    %387 = vrot.lane.b32.xlu0 %v353, 64
    %v388 = vpop.permute.xlu0 %387
    %389 = vrot.lane.b32.xlu0 %v354, 64
    %v390 = vpop.permute.xlu0 %389
    %391 = vrot.lane.b32.xlu0 %v355, 64
    %v392 = vpop.permute.xlu0 %391
    %393 = vrot.lane.b32.xlu0 %v356, 64
    %v394 = vpop.permute.xlu0 %393
    %395 = vrot.lane.b32.xlu0 %v357, 64
    %v396 = vpop.permute.xlu0 %395
    %397 = vrot.lane.b32.xlu0 %v358, 64
    %v398 = vpop.permute.xlu0 %397
    %399 = vrot.lane.b32.xlu0 %v359, 64
    %v400 = vpop.permute.xlu0 %399
    %401 = vrot.lane.b32.xlu0 %v360, 64
    %v402 = vpop.permute.xlu0 %401
    %403 = vrot.lane.b32.xlu0 %v361, 64
    %v404 = vpop.permute.xlu0 %403
    %405 = vrot.lane.b32.xlu0 %v362, 64
    %v406 = vpop.permute.xlu0 %405
    %407 = vrot.lane.b32.xlu0 %v363, 64
    %v408 = vpop.permute.xlu0 %407
    %409 = vrot.lane.b32.xlu0 %v364, 64
    %v410 = vpop.permute.xlu0 %409
    %411 = vrot.lane.b32.xlu0 %v365, 64
    %v412 = vpop.permute.xlu0 %411
    %413 = vrot.lane.b32.xlu0 %v366, 64
    %v414 = vpop.permute.xlu0 %413
    %v431 = vmul.f32 %v173, %v384
    %v432 = vmul.f32 %v178, %v386
    %v433 = vmul.f32 %v173, %v388
    %v434 = vmul.f32 %v178, %v390
    %v435 = vmul.f32 %v173, %v392
    %v436 = vmul.f32 %v178, %v394
    %v437 = vmul.f32 %v173, %v396
    %v438 = vmul.f32 %v178, %v398
    %v439 = vmul.f32 %v173, %v400
    %v440 = vmul.f32 %v178, %v402
    %v441 = vmul.f32 %v173, %v404
    %v442 = vmul.f32 %v178, %v406
    %v443 = vmul.f32 %v173, %v408
    %v444 = vmul.f32 %v178, %v410
    %v445 = vmul.f32 %v173, %v412
    %v446 = vmul.f32 %v178, %v414
    %v447 = vld [vmem:[#allocation7] sm:$0xff]
    %v448 = vld [vmem:[#allocation7 + $0x8] sm:$0xff]
    %v449 = vsel %vm99, %v173, 0
    %v451 = vsel %vm99, %v178, 0
    %453 = vmatprep.subr.mxu0 0.0
    %454 = vmatpush1.msra.mxu0 0.0
    %455 = vmatprep.subr.mxu0 0.0
    %456 = vmatpush1.msra.mxu0 0.0
    %457 = vmatprep.subr.mxu0 0.0
    %458 = vmatpush1.msra.mxu0 0.0
    %459 = vmatprep.subr.mxu0 0.0
    %460 = vmatpush1.msra.mxu0 0.0
    %461 = vmatprep.subr.mxu0 0.0
    %462 = vmatpush1.msra.mxu0 0.0
    %463 = vmatprep.subr.mxu0 0.0
    %464 = vmatpush1.msra.mxu0 0.0
    %465 = vmatprep.subr.mxu0 0.0
    %466 = vmatpush1.msra.mxu0 0.0
    %467 = vmatprep.subr.mxu0 0.0
    %468 = vmatpush1.msra.mxu0 0.0
    %469 = vmatprep.subr.mxu0 0.0
    %470 = vmatpush1.msra.mxu0 0.0
    %471 = vmatprep.subr.mxu0 0.0
    %472 = vmatpush1.msra.mxu0 0.0
    %473 = vmatprep.subr.mxu0 0.0
    %474 = vmatpush1.msra.mxu0 0.0
    %475 = vmatprep.subr.mxu0 0.0
    %476 = vmatpush1.msra.mxu0 0.0
    %477 = vmatprep.subr.mxu0 0.0
    %478 = vmatpush1.msra.mxu0 %v350
    %479 = vmatprep.subr.mxu0 0.0
    %480 = vmatpush1.msra.mxu0 %v349
    %481 = vmatprep.subr.mxu0 0.0
    %482 = vmatpush1.msra.mxu0 %v348
    %483 = vmatprep.subr.mxu0 0.0
    %484 = vmatpush1.msra.mxu0 %v347
    %485 = vmatprep.subr.mxu0 0.0
    %486 = vmatpush2.msra.mxu0 0.0
    %487 = vmatprep.subr.mxu0 0.0
    %488 = vmatpush2.msra.mxu0 0.0
    %489 = vmatprep.subr.mxu0 0.0
    %490 = vmatpush2.msra.mxu0 0.0
    %491 = vmatprep.subr.mxu0 0.0
    %492 = vmatpush2.msra.mxu0 0.0
    %493 = vmatprep.subr.mxu0 0.0
    %494 = vmatpush2.msra.mxu0 0.0
    %495 = vmatprep.subr.mxu0 0.0
    %496 = vmatpush2.msra.mxu0 0.0
    %497 = vmatprep.subr.mxu0 0.0
    %498 = vmatpush2.msra.mxu0 0.0
    %499 = vmatprep.subr.mxu0 0.0
    %500 = vmatpush2.msra.mxu0 0.0
    %501 = vmatprep.subr.mxu0 0.0
    %502 = vmatpush2.msra.mxu0 0.0
    %503 = vmatprep.subr.mxu0 0.0
    %504 = vmatpush2.msra.mxu0 0.0
    %505 = vmatprep.subr.mxu0 0.0
    %506 = vmatpush2.msra.mxu0 0.0
    %507 = vmatprep.subr.mxu0 0.0
    %508 = vmatpush2.msra.mxu0 0.0
    %509 = vmatprep.subr.mxu0 0.0
    %510 = vmatpush2.msra.mxu0 0.0
    %511 = vmatprep.subr.mxu0 0.0
    %512 = vmatpush2.msra.mxu0 0.0
    %513 = vmatprep.subr.mxu0 0.0
    %514 = vmatpush2.msra.mxu0 0.0
    %515 = vmatprep.subr.mxu0 0.0
    %516 = vmatpush2.msra.mxu0 0.0
    %517 = vmatprep.mubr.f32.mxu0 0.0
    %518 = vmatmul.mubr.f32.gmra.mxu0 %v449
    %v519 = vpop.f32.mrf.mxu0
    %v520 = vadd.f32 %v447, %v519
    %v521 = vpop.f32.mrf.mxu0
    %522 = vmatprep.mubr.f32.mxu0 0.0
    %523 = vmatmul.mubr.f32.gmra.mxu0 %v451
    %v524 = vpop.f32.mrf.mxu0
    %v525 = vadd.f32 %v448, %v524
    %v526 = vpop.f32.mrf.mxu0
    %527 = vdwg.mxu0
    %v528 = vxor.u32 %v520, 2147483648
    %v529 = vxor.u32 %v525, 2147483648
    %v530 = vmul.f32 %v528, 1.442695
    %v531 = vpow.pop %v530
    %v532 = vmul.f32 %v529, 1.442695
    %v533 = vpow.pop %v532
    %v534 = vadd.f32 %v531, 1.0
    %v535 = vadd.f32 %v533, 1.0
    %v536 = vrcp.pop %v534
    %v537 = vmul.f32 1.0, %v536
    %v538 = vrcp.pop %v535
    %v539 = vmul.f32 1.0, %v538
    %556 = vrot.lane.b32.xlu0 %v431, 64
    %v557 = vpop.permute.xlu0 %556
    %558 = vrot.lane.b32.xlu0 %v432, 64
    %v559 = vpop.permute.xlu0 %558
    %560 = vrot.lane.b32.xlu0 %v433, 64
    %v561 = vpop.permute.xlu0 %560
    %562 = vrot.lane.b32.xlu0 %v434, 64
    %v563 = vpop.permute.xlu0 %562
    %564 = vrot.lane.b32.xlu0 %v435, 64
    %v565 = vpop.permute.xlu0 %564
    %566 = vrot.lane.b32.xlu0 %v436, 64
    %v567 = vpop.permute.xlu0 %566
    %568 = vrot.lane.b32.xlu0 %v437, 64
    %v569 = vpop.permute.xlu0 %568
    %570 = vrot.lane.b32.xlu0 %v438, 64
    %v571 = vpop.permute.xlu0 %570
    %572 = vrot.lane.b32.xlu0 %v439, 64
    %v573 = vpop.permute.xlu0 %572
    %574 = vrot.lane.b32.xlu0 %v440, 64
    %v575 = vpop.permute.xlu0 %574
    %576 = vrot.lane.b32.xlu0 %v441, 64
    %v577 = vpop.permute.xlu0 %576
    %578 = vrot.lane.b32.xlu0 %v442, 64
    %v579 = vpop.permute.xlu0 %578
    %580 = vrot.lane.b32.xlu0 %v443, 64
    %v581 = vpop.permute.xlu0 %580
    %582 = vrot.lane.b32.xlu0 %v444, 64
    %v583 = vpop.permute.xlu0 %582
    %584 = vrot.lane.b32.xlu0 %v445, 64
    %v585 = vpop.permute.xlu0 %584
    %586 = vrot.lane.b32.xlu0 %v446, 64
    %v587 = vpop.permute.xlu0 %586
    %604 = vmatprep.subr.mxu0 0.0
    %605 = vmatpush1.msra.mxu0 %v587
    %606 = vmatprep.subr.mxu0 0.0
    %607 = vmatpush1.msra.mxu0 %v585
    %608 = vmatprep.subr.mxu0 0.0
    %609 = vmatpush1.msra.mxu0 %v583
    %610 = vmatprep.subr.mxu0 0.0
    %611 = vmatpush1.msra.mxu0 %v581
    %612 = vmatprep.subr.mxu0 0.0
    %613 = vmatpush1.msra.mxu0 %v579
    %614 = vmatprep.subr.mxu0 0.0
    %615 = vmatpush1.msra.mxu0 %v577
    %616 = vmatprep.subr.mxu0 0.0
    %617 = vmatpush1.msra.mxu0 %v575
    %618 = vmatprep.subr.mxu0 0.0
    %619 = vmatpush1.msra.mxu0 %v573
    %620 = vmatprep.subr.mxu0 0.0
    %621 = vmatpush1.msra.mxu0 %v571
    %622 = vmatprep.subr.mxu0 0.0
    %623 = vmatpush1.msra.mxu0 %v569
    %624 = vmatprep.subr.mxu0 0.0
    %625 = vmatpush1.msra.mxu0 %v567
    %626 = vmatprep.subr.mxu0 0.0
    %627 = vmatpush1.msra.mxu0 %v565
    %628 = vmatprep.subr.mxu0 0.0
    %629 = vmatpush1.msra.mxu0 %v563
    %630 = vmatprep.subr.mxu0 0.0
    %631 = vmatpush1.msra.mxu0 %v561
    %632 = vmatprep.subr.mxu0 0.0
    %633 = vmatpush1.msra.mxu0 %v559
    %634 = vmatprep.subr.mxu0 0.0
    %635 = vmatpush1.msra.mxu0 %v557
    %636 = vmatprep.subr.mxu0 0.0
    %637 = vmatpush2.msra.mxu0 0.0
    %638 = vmatprep.subr.mxu0 0.0
    %639 = vmatpush2.msra.mxu0 0.0
    %640 = vmatprep.subr.mxu0 0.0
    %641 = vmatpush2.msra.mxu0 0.0
    %642 = vmatprep.subr.mxu0 0.0
    %643 = vmatpush2.msra.mxu0 0.0
    %644 = vmatprep.subr.mxu0 0.0
    %645 = vmatpush2.msra.mxu0 0.0
    %646 = vmatprep.subr.mxu0 0.0
    %647 = vmatpush2.msra.mxu0 0.0
    %648 = vmatprep.subr.mxu0 0.0
    %649 = vmatpush2.msra.mxu0 0.0
    %650 = vmatprep.subr.mxu0 0.0
    %651 = vmatpush2.msra.mxu0 0.0
    %652 = vmatprep.subr.mxu0 0.0
    %653 = vmatpush2.msra.mxu0 0.0
    %654 = vmatprep.subr.mxu0 0.0
    %655 = vmatpush2.msra.mxu0 0.0
    %656 = vmatprep.subr.mxu0 0.0
    %657 = vmatpush2.msra.mxu0 0.0
    %658 = vmatprep.subr.mxu0 0.0
    %659 = vmatpush2.msra.mxu0 0.0
    %660 = vmatprep.subr.mxu0 0.0
    %661 = vmatpush2.msra.mxu0 0.0
    %662 = vmatprep.subr.mxu0 0.0
    %663 = vmatpush2.msra.mxu0 0.0
    %664 = vmatprep.subr.mxu0 0.0
    %665 = vmatpush2.msra.mxu0 0.0
    %666 = vmatprep.subr.mxu0 0.0
    %667 = vmatpush2.msra.mxu0 0.0
    %668 = vmatprep.mubr.f32.mxu0 0.0
    %669 = vmatmul.mubr.f32.gmra.mxu0 %v537
    %v670 = vpop.f32.mrf.mxu0
    %v671 = vadd.f32 0.0, %v670
    %v672 = vpop.f32.mrf.mxu0
    %673 = vmatprep.mubr.f32.mxu0 0.0
    %674 = vmatmul.mubr.f32.gmra.mxu0 %v539
    %v675 = vpop.f32.mrf.mxu0
    %v676 = vadd.f32 0.0, %v675
    %v677 = vpop.f32.mrf.mxu0
    %678 = vdwg.mxu0
    %v679 = vld [vmem:[%s6] sm:$0xff]
    %v680 = vld [vmem:[%s6 + $0x8] sm:$0xff]
    %v681 = vld [vmem:[%s6 + $0x10] sm:$0xff]
    %v682 = vld [vmem:[%s6 + $0x18] sm:$0xff]
    %v683 = vlaneseq
    %v684 = vshrl.u32 %v683, 7
    %v685 = vsub.s32 0, %v684
    %v686 = vrot.slane %v83, %v685
    %v688 = vsel %vm99, %v671, 0
    %v691 = vsel %vm99, %v676, 0
    %693 = vmatprep.subr.mxu0 0.0
    %694 = vmatpush1.msra.mxu0 0.0
    %695 = vmatprep.subr.mxu0 0.0
    %696 = vmatpush1.msra.mxu0 0.0
    %697 = vmatprep.subr.mxu0 0.0
    %698 = vmatpush1.msra.mxu0 0.0
    %699 = vmatprep.subr.mxu0 0.0
    %700 = vmatpush1.msra.mxu0 0.0
    %701 = vmatprep.subr.mxu0 0.0
    %702 = vmatpush1.msra.mxu0 0.0
    %703 = vmatprep.subr.mxu0 0.0
    %704 = vmatpush1.msra.mxu0 0.0
    %705 = vmatprep.subr.mxu0 0.0
    %706 = vmatpush1.msra.mxu0 0.0
    %707 = vmatprep.subr.mxu0 0.0
    %708 = vmatpush1.msra.mxu0 0.0
    %709 = vmatprep.subr.mxu0 0.0
    %710 = vmatpush1.msra.mxu0 0.0
    %711 = vmatprep.subr.mxu0 0.0
    %712 = vmatpush1.msra.mxu0 0.0
    %713 = vmatprep.subr.mxu0 0.0
    %714 = vmatpush1.msra.mxu0 0.0
    %715 = vmatprep.subr.mxu0 0.0
    %716 = vmatpush1.msra.mxu0 0.0
    %717 = vmatprep.subr.mxu0 0.0
    %718 = vmatpush1.msra.mxu0 %v682
    %719 = vmatprep.subr.mxu0 0.0
    %720 = vmatpush1.msra.mxu0 %v681
    %721 = vmatprep.subr.mxu0 0.0
    %722 = vmatpush1.msra.mxu0 %v680
    %723 = vmatprep.subr.mxu0 0.0
    %724 = vmatpush1.msra.mxu0 %v679
    %725 = vmatprep.subr.mxu0 0.0
    %726 = vmatpush2.msra.mxu0 0.0
    %727 = vmatprep.subr.mxu0 0.0
    %728 = vmatpush2.msra.mxu0 0.0
    %729 = vmatprep.subr.mxu0 0.0
    %730 = vmatpush2.msra.mxu0 0.0
    %731 = vmatprep.subr.mxu0 0.0
    %732 = vmatpush2.msra.mxu0 0.0
    %733 = vmatprep.subr.mxu0 0.0
    %734 = vmatpush2.msra.mxu0 0.0
    %735 = vmatprep.subr.mxu0 0.0
    %736 = vmatpush2.msra.mxu0 0.0
    %737 = vmatprep.subr.mxu0 0.0
    %738 = vmatpush2.msra.mxu0 0.0
    %739 = vmatprep.subr.mxu0 0.0
    %740 = vmatpush2.msra.mxu0 0.0
    %741 = vmatprep.subr.mxu0 0.0
    %742 = vmatpush2.msra.mxu0 0.0
    %743 = vmatprep.subr.mxu0 0.0
    %744 = vmatpush2.msra.mxu0 0.0
    %745 = vmatprep.subr.mxu0 0.0
    %746 = vmatpush2.msra.mxu0 0.0
    %747 = vmatprep.subr.mxu0 0.0
    %748 = vmatpush2.msra.mxu0 0.0
    %749 = vmatprep.subr.mxu0 0.0
    %750 = vmatpush2.msra.mxu0 0.0
    %751 = vmatprep.subr.mxu0 0.0
    %752 = vmatpush2.msra.mxu0 0.0
    %753 = vmatprep.subr.mxu0 0.0
    %754 = vmatpush2.msra.mxu0 0.0
    %755 = vmatprep.subr.mxu0 0.0
    %756 = vmatpush2.msra.mxu0 0.0
    %757 = vmatprep.mubr.f32.mxu0 0.0
    %758 = vmatmul.mubr.f32.gmra.mxu0 %v688
    %v759 = vpop.f32.mrf.mxu0
    %v760 = vadd.f32 %v686, %v759
    %v761 = vpop.f32.mrf.mxu0
    %762 = vmatprep.mubr.f32.mxu0 0.0
    %763 = vmatmul.mubr.f32.gmra.mxu0 %v691
    %v764 = vpop.f32.mrf.mxu0
    %v765 = vadd.f32 %v686, %v764
    %v766 = vpop.f32.mrf.mxu0
    %767 = vdwg.mxu0
    %v768 = vadd.f32 %v88, %v760
    %v769 = vadd.f32 %v89, %v765
    %v770 = vsel %vm99, %v768, 0.0
    %771 = vadd.xlane.f32.xlu0 %v770
    %v772 = vpop.xlane.xlu0 %771
    %v773 = vsel %vm99, %v769, 0.0
    %774 = vadd.xlane.f32.xlu0 %v773
    %v775 = vpop.xlane.xlu0 %774
    %v776 = vrcp.pop 32.0
    %v777 = vmul.f32 %v772, %v776
    %v778 = vmul.f32 %v775, %v776
    %v779 = vsub.f32 %v768, %v777
    %v780 = vsub.f32 %v769, %v778
    %v781 = vmul.f32 %v779, %v779
    %v782 = vmul.f32 %v780, %v780
    %v783 = vsel %vm99, %v781, 0.0
    %784 = vadd.xlane.f32.xlu0 %v783
    %v785 = vpop.xlane.xlu0 %784
    %v786 = vsel %vm99, %v782, 0.0
    %787 = vadd.xlane.f32.xlu0 %v786
    %v788 = vpop.xlane.xlu0 %787
    %v789 = vmul.f32 %v785, %v776
    %v790 = vmul.f32 %v788, %v776
    %v791 = vadd.f32 %v789, 1e-05
    %v792 = vadd.f32 %v790, 1e-05
    %v793 = vrsqrt.pop %v791
    %v794 = vrsqrt.pop %v792
    %v795 = vmul.f32 %v779, %v793
    %v796 = vmul.f32 %v780, %v794
    %v797 = vlaneseq
    %v798 = vshrl.u32 %v797, 7
    %v799 = vsub.s32 1, %v798
    %v800 = vrot.slane %v83, %v799
    %v801 = vmul.f32 %v795, %v800
    %v802 = vmul.f32 %v796, %v800
    %v803 = vlaneseq
    %v804 = vshrl.u32 %v803, 7
    %v805 = vsub.s32 2, %v804
    %v806 = vrot.slane %v83, %v805
    %v807 = vadd.f32 %v801, %v806
    %v808 = vadd.f32 %v802, %v806
    %s809 = scalar_lea.vmem %s6, 32
    %v810 = vld [vmem:[%s809] sm:$0xff]
    %v811 = vld [vmem:[%s809 + $0x8] sm:$0xff]
    %v812 = vld [vmem:[%s809 + $0x10] sm:$0xff]
    %v813 = vld [vmem:[%s809 + $0x18] sm:$0xff]
    %v814 = vlaneseq
    %v815 = vshrl.u32 %v814, 7
    %v816 = vsub.s32 3, %v815
    %v817 = vrot.slane %v83, %v816
    %v819 = vsel %vm99, %v807, 0
    %v822 = vsel %vm99, %v808, 0
    %824 = vmatprep.subr.mxu0 0.0
    %825 = vmatpush1.msra.mxu0 0.0
    %826 = vmatprep.subr.mxu0 0.0
    %827 = vmatpush1.msra.mxu0 0.0
    %828 = vmatprep.subr.mxu0 0.0
    %829 = vmatpush1.msra.mxu0 0.0
    %830 = vmatprep.subr.mxu0 0.0
    %831 = vmatpush1.msra.mxu0 0.0
    %832 = vmatprep.subr.mxu0 0.0
    %833 = vmatpush1.msra.mxu0 0.0
    %834 = vmatprep.subr.mxu0 0.0
    %835 = vmatpush1.msra.mxu0 0.0
    %836 = vmatprep.subr.mxu0 0.0
    %837 = vmatpush1.msra.mxu0 0.0
    %838 = vmatprep.subr.mxu0 0.0
    %839 = vmatpush1.msra.mxu0 0.0
    %840 = vmatprep.subr.mxu0 0.0
    %841 = vmatpush1.msra.mxu0 0.0
    %842 = vmatprep.subr.mxu0 0.0
    %843 = vmatpush1.msra.mxu0 0.0
    %844 = vmatprep.subr.mxu0 0.0
    %845 = vmatpush1.msra.mxu0 0.0
    %846 = vmatprep.subr.mxu0 0.0
    %847 = vmatpush1.msra.mxu0 0.0
    %848 = vmatprep.subr.mxu0 0.0
    %849 = vmatpush1.msra.mxu0 %v813
    %850 = vmatprep.subr.mxu0 0.0
    %851 = vmatpush1.msra.mxu0 %v812
    %852 = vmatprep.subr.mxu0 0.0
    %853 = vmatpush1.msra.mxu0 %v811
    %854 = vmatprep.subr.mxu0 0.0
    %855 = vmatpush1.msra.mxu0 %v810
    %856 = vmatprep.subr.mxu0 0.0
    %857 = vmatpush2.msra.mxu0 0.0
    %858 = vmatprep.subr.mxu0 0.0
    %859 = vmatpush2.msra.mxu0 0.0
    %860 = vmatprep.subr.mxu0 0.0
    %861 = vmatpush2.msra.mxu0 0.0
    %862 = vmatprep.subr.mxu0 0.0
    %863 = vmatpush2.msra.mxu0 0.0
    %864 = vmatprep.subr.mxu0 0.0
    %865 = vmatpush2.msra.mxu0 0.0
    %866 = vmatprep.subr.mxu0 0.0
    %867 = vmatpush2.msra.mxu0 0.0
    %868 = vmatprep.subr.mxu0 0.0
    %869 = vmatpush2.msra.mxu0 0.0
    %870 = vmatprep.subr.mxu0 0.0
    %871 = vmatpush2.msra.mxu0 0.0
    %872 = vmatprep.subr.mxu0 0.0
    %873 = vmatpush2.msra.mxu0 0.0
    %874 = vmatprep.subr.mxu0 0.0
    %875 = vmatpush2.msra.mxu0 0.0
    %876 = vmatprep.subr.mxu0 0.0
    %877 = vmatpush2.msra.mxu0 0.0
    %878 = vmatprep.subr.mxu0 0.0
    %879 = vmatpush2.msra.mxu0 0.0
    %880 = vmatprep.subr.mxu0 0.0
    %881 = vmatpush2.msra.mxu0 0.0
    %882 = vmatprep.subr.mxu0 0.0
    %883 = vmatpush2.msra.mxu0 0.0
    %884 = vmatprep.subr.mxu0 0.0
    %885 = vmatpush2.msra.mxu0 0.0
    %886 = vmatprep.subr.mxu0 0.0
    %887 = vmatpush2.msra.mxu0 0.0
    %888 = vmatprep.mubr.f32.mxu0 0.0
    %889 = vmatmul.mubr.f32.gmra.mxu0 %v819
    %v890 = vpop.f32.mrf.mxu0
    %v891 = vadd.f32 %v817, %v890
    %v892 = vpop.f32.mrf.mxu0
    %893 = vmatprep.mubr.f32.mxu0 0.0
    %894 = vmatmul.mubr.f32.gmra.mxu0 %v822
    %v895 = vpop.f32.mrf.mxu0
    %v896 = vadd.f32 %v817, %v895
    %v897 = vpop.f32.mrf.mxu0
    %898 = vdwg.mxu0
    %v899 = vmax.f32 %v891, 0.0
    %v900 = vmax.f32 %v896, 0.0
    %s901 = scalar_lea.vmem %s6, 64
    %v902 = vld [vmem:[%s901] sm:$0xff]
    %v903 = vld [vmem:[%s901 + $0x8] sm:$0xff]
    %v904 = vld [vmem:[%s901 + $0x10] sm:$0xff]
    %v905 = vld [vmem:[%s901 + $0x18] sm:$0xff]
    %v906 = vlaneseq
    %v907 = vshrl.u32 %v906, 7
    %v908 = vsub.s32 4, %v907
    %v909 = vrot.slane %v83, %v908
    %v911 = vsel %vm99, %v899, 0
    %v914 = vsel %vm99, %v900, 0
    %916 = vmatprep.subr.mxu0 0.0
    %917 = vmatpush1.msra.mxu0 0.0
    %918 = vmatprep.subr.mxu0 0.0
    %919 = vmatpush1.msra.mxu0 0.0
    %920 = vmatprep.subr.mxu0 0.0
    %921 = vmatpush1.msra.mxu0 0.0
    %922 = vmatprep.subr.mxu0 0.0
    %923 = vmatpush1.msra.mxu0 0.0
    %924 = vmatprep.subr.mxu0 0.0
    %925 = vmatpush1.msra.mxu0 0.0
    %926 = vmatprep.subr.mxu0 0.0
    %927 = vmatpush1.msra.mxu0 0.0
    %928 = vmatprep.subr.mxu0 0.0
    %929 = vmatpush1.msra.mxu0 0.0
    %930 = vmatprep.subr.mxu0 0.0
    %931 = vmatpush1.msra.mxu0 0.0
    %932 = vmatprep.subr.mxu0 0.0
    %933 = vmatpush1.msra.mxu0 0.0
    %934 = vmatprep.subr.mxu0 0.0
    %935 = vmatpush1.msra.mxu0 0.0
    %936 = vmatprep.subr.mxu0 0.0
    %937 = vmatpush1.msra.mxu0 0.0
    %938 = vmatprep.subr.mxu0 0.0
    %939 = vmatpush1.msra.mxu0 0.0
    %940 = vmatprep.subr.mxu0 0.0
    %941 = vmatpush1.msra.mxu0 %v905
    %942 = vmatprep.subr.mxu0 0.0
    %943 = vmatpush1.msra.mxu0 %v904
    %944 = vmatprep.subr.mxu0 0.0
    %945 = vmatpush1.msra.mxu0 %v903
    %946 = vmatprep.subr.mxu0 0.0
    %947 = vmatpush1.msra.mxu0 %v902
    %948 = vmatprep.subr.mxu0 0.0
    %949 = vmatpush2.msra.mxu0 0.0
    %950 = vmatprep.subr.mxu0 0.0
    %951 = vmatpush2.msra.mxu0 0.0
    %952 = vmatprep.subr.mxu0 0.0
    %953 = vmatpush2.msra.mxu0 0.0
    %954 = vmatprep.subr.mxu0 0.0
    %955 = vmatpush2.msra.mxu0 0.0
    %956 = vmatprep.subr.mxu0 0.0
    %957 = vmatpush2.msra.mxu0 0.0
    %958 = vmatprep.subr.mxu0 0.0
    %959 = vmatpush2.msra.mxu0 0.0
    %960 = vmatprep.subr.mxu0 0.0
    %961 = vmatpush2.msra.mxu0 0.0
    %962 = vmatprep.subr.mxu0 0.0
    %963 = vmatpush2.msra.mxu0 0.0
    %964 = vmatprep.subr.mxu0 0.0
    %965 = vmatpush2.msra.mxu0 0.0
    %966 = vmatprep.subr.mxu0 0.0
    %967 = vmatpush2.msra.mxu0 0.0
    %968 = vmatprep.subr.mxu0 0.0
    %969 = vmatpush2.msra.mxu0 0.0
    %970 = vmatprep.subr.mxu0 0.0
    %971 = vmatpush2.msra.mxu0 0.0
    %972 = vmatprep.subr.mxu0 0.0
    %973 = vmatpush2.msra.mxu0 0.0
    %974 = vmatprep.subr.mxu0 0.0
    %975 = vmatpush2.msra.mxu0 0.0
    %976 = vmatprep.subr.mxu0 0.0
    %977 = vmatpush2.msra.mxu0 0.0
    %978 = vmatprep.subr.mxu0 0.0
    %979 = vmatpush2.msra.mxu0 0.0
    %980 = vmatprep.mubr.f32.mxu0 0.0
    %981 = vmatmul.mubr.f32.gmra.mxu0 %v911
    %v982 = vpop.f32.mrf.mxu0
    %v983 = vadd.f32 %v909, %v982
    %v984 = vpop.f32.mrf.mxu0
    %985 = vmatprep.mubr.f32.mxu0 0.0
    %986 = vmatmul.mubr.f32.gmra.mxu0 %v914
    %v987 = vpop.f32.mrf.mxu0
    %v988 = vadd.f32 %v909, %v987
    %v989 = vpop.f32.mrf.mxu0
    %990 = vdwg.mxu0
    %v991 = vadd.f32 %v807, %v983
    %v992 = vadd.f32 %v808, %v988
    %v993 = vsel %vm99, %v991, 0.0
    %994 = vadd.xlane.f32.xlu0 %v993
    %v995 = vpop.xlane.xlu0 %994
    %v996 = vsel %vm99, %v992, 0.0
    %997 = vadd.xlane.f32.xlu0 %v996
    %v998 = vpop.xlane.xlu0 %997
    %v999 = vmul.f32 %v995, %v776
    %v1000 = vmul.f32 %v998, %v776
    %v1001 = vsub.f32 %v991, %v999
    %v1002 = vsub.f32 %v992, %v1000
    %v1003 = vmul.f32 %v1001, %v1001
    %v1004 = vmul.f32 %v1002, %v1002
    %v1005 = vsel %vm99, %v1003, 0.0
    %1006 = vadd.xlane.f32.xlu0 %v1005
    %v1007 = vpop.xlane.xlu0 %1006
    %v1008 = vsel %vm99, %v1004, 0.0
    %1009 = vadd.xlane.f32.xlu0 %v1008
    %v1010 = vpop.xlane.xlu0 %1009
    %v1011 = vmul.f32 %v1007, %v776
    %v1012 = vmul.f32 %v1010, %v776
    %v1013 = vadd.f32 %v1011, 1e-05
    %v1014 = vadd.f32 %v1012, 1e-05
    %v1015 = vrsqrt.pop %v1013
    %v1016 = vrsqrt.pop %v1014
    %v1017 = vmul.f32 %v1001, %v1015
    %v1018 = vmul.f32 %v1002, %v1016
    %v1019 = vlaneseq
    %v1020 = vshrl.u32 %v1019, 7
    %v1021 = vsub.s32 5, %v1020
    %v1022 = vrot.slane %v83, %v1021
    %v1023 = vmul.f32 %v1017, %v1022
    %v1024 = vmul.f32 %v1018, %v1022
    %v1025 = vlaneseq
    %v1026 = vshrl.u32 %v1025, 7
    %v1027 = vsub.s32 6, %v1026
    %v1028 = vrot.slane %v83, %v1027
    %v1029 = vadd.f32 %v1023, %v1028
    %v1030 = vadd.f32 %v1024, %v1028
    %1031 = vst.msk [vmem:[#allocation10] sm:$0xff] %vm99, %v1029
    %1032 = vst.msk [vmem:[#allocation10 + $0x8] sm:$0xff] %vm99, %v1030
    // Predicated region
    $region50: #{tpu_custom_call.1} parent=1 // pred_check
      _
    $region51: #{tpu_custom_call.1} parent=1 // pred_check_branch
      %1034 = sbr.rel (0) target = $region53
    $region52: #{tpu_custom_call.1} parent=1 // pred_region
      %s1036 = ssub.s32 256, 256
      %1037 = vsyncadd [#allocation4], %s1036
      %s1038 = sshll.u32 [#allocation10], 4
      %s1039 = int_to_ptr.vmem [resolvable:$true] %s1038
      %1044 = dma.vmem_to_hbm [thread:$0]  %s1039, 256, %s8, [#allocation4], 128, 128, 8
    $region53: #{tpu_custom_call.1} parent=1 // pred_fallthru
      _
    // Predicated region
    $region54: #{tpu_custom_call.1} parent=1 // pred_check
      _
    $region55: #{tpu_custom_call.1} parent=1 // pred_check_branch
      %1046 = sbr.rel (0) target = $region57
    $region56: #{tpu_custom_call.1} parent=1 // pred_region
      %1047 = dma.done [#allocation4], 256
    $region57: #{tpu_custom_call.1} parent=1 // pred_fallthru
      _
    %1048 = vsyncpa [#allocation3], 1
    %1049 = vsyncpa [#allocation6], 1
    %1050 = vsyncpa [#allocation9], 1
    %1051 = vsyncpa [#allocation4], 1

</llo_original>
